<compile_context>
chip_gen: v7x
topology: tpu7x:2x2x1
jax: 0.10.0
libtpu: 0.0.40
codegen_flags: <defaults>
</compile_context>

<pallas_src>
import functools

import jax
import jax.numpy as jnp
from jax.experimental import pallas as pl
from jax.experimental.pallas import tpu as pltpu

_SUBLANE = 8


def _round_up(n, m):
    return ((n + m - 1) // m) * m


def imputer_kernel(x_ref, mask_ref, w1_ref, b1_ref, w2_ref, b2_ref, out_ref):
    # x_ref:   [TB, D] f32        mask_ref: [1, D] f32 (1.0 where feature is missing)
    # w1_ref:  [D, H]  f32        b1_ref:   [1, H] f32
    # w2_ref:  [H, D]  f32        b2_ref:   [1, D] f32
    x = x_ref[...]

    # Encoder: h = relu(x @ W1 + b1)   (f32 MXU matmul, f32 accumulate)
    h = jnp.dot(x, w1_ref[...], preferred_element_type=jnp.float32) + b1_ref[...]
    h = jnp.maximum(h, 0.0)

    # Decoder: recon = h @ W2 + b2
    recon = jnp.dot(h, w2_ref[...], preferred_element_type=jnp.float32) + b2_ref[...]

    # Masked merge (single vselect): x[:, missings] = recon[:, missings]
    out_ref[...] = jnp.where(mask_ref[...] > 0.0, recon, x).astype(out_ref.dtype)


def prepare_imputer_params(w1, b1, w2, b2, missings, num_features):
    """One-time (per-model) parameter prep, hoisted out of the per-call path."""
    D = int(num_features)
    H = w1.shape[1]
    if missings.size:
        # PyTorch advanced indexing would raise on out-of-range indices; the JAX scatter
        # silently drops them, so check eagerly here (outside jit, indices are concrete).
        mi = jax.device_get(missings)
        assert (mi >= 0).all() and (mi < D).all(), "missings indices out of range"
    mask = jnp.zeros((1, D), jnp.float32).at[0, missings].set(1.0)
    return (w1.astype(jnp.float32),
            b1.reshape(1, H).astype(jnp.float32),
            w2.astype(jnp.float32),
            b2.reshape(1, D).astype(jnp.float32),
            mask)


@functools.partial(jax.jit, static_argnames=("tb",), donate_argnums=(0,))
def imputer_forward(x, mask, w1, b1, w2, b2, *, tb=256):
    """Functional equivalent of Imputer.forward(x, missings).

    x:    [B, D] float32 (donated: overwritten in place, like the PyTorch module)
    mask: [1, D] float32 missing-feature mask from prepare_imputer_params.
    """
    B, D = x.shape
    H = w1.shape[1]

    # Only pad the batch to a sublane multiple (<= 7 dead rows); never lane-pad D.
    Bp = _round_up(B, _SUBLANE)
    if Bp != B:
        x = jnp.pad(x, ((0, Bp - B), (0, 0)))

    TB = min(_round_up(tb, _SUBLANE), Bp)
    grid = (pl.cdiv(Bp, TB),)

    out = pl.pallas_call(
        imputer_kernel,
        out_shape=jax.ShapeDtypeStruct((Bp, D), x.dtype),
        grid=grid,
        in_specs=[
            pl.BlockSpec((TB, D), lambda i: (i, 0)),  # x: batch-tiled, pipelined
            pl.BlockSpec((1, D), lambda i: (0, 0)),   # mask  (VMEM-resident)
            pl.BlockSpec((D, H), lambda i: (0, 0)),   # w1    (VMEM-resident)
            pl.BlockSpec((1, H), lambda i: (0, 0)),   # b1
            pl.BlockSpec((H, D), lambda i: (0, 0)),   # w2
            pl.BlockSpec((1, D), lambda i: (0, 0)),   # b2
        ],
        out_specs=pl.BlockSpec((TB, D), lambda i: (i, 0)),
        input_output_aliases={0: 0},                  # overwrite x's HBM buffer in place
        compiler_params=pltpu.CompilerParams(
            dimension_semantics=("parallel",),        # batch tiles independent (2 TCs on v7x)
        ),
    )(x, mask, w1, b1, w2, b2)

    if Bp != B:
        out = out[:B]
    return out


def reference_forward(x, missings, w1, b1, w2, b2):
    """Pure-JAX f32 reference mirroring the PyTorch module semantics."""
    h = jnp.maximum(jnp.dot(x, w1, preferred_element_type=jnp.float32) + b1, 0.0)
    recon = jnp.dot(h, w2, preferred_element_type=jnp.float32) + b2
    return x.at[:, missings].set(recon[:, missings])


if __name__ == "__main__":
    B, D, H = 64, 32, 16   # small demo; tb=32 -> grid of 2 pipelined batch tiles

    key = jax.random.PRNGKey(0)
    k_x, k_w1, k_b1, k_w2, k_b2 = jax.random.split(key, 5)

    x = jax.random.normal(k_x, (B, D), jnp.float32)
    # Deterministic synthetic autoencoder parameters.
    w1 = jax.random.normal(k_w1, (D, H), jnp.float32) * 0.1
    b1 = jax.random.normal(k_b1, (H,), jnp.float32) * 0.01
    w2 = jax.random.normal(k_w2, (H, D), jnp.float32) * 0.1
    b2 = jax.random.normal(k_b2, (D,), jnp.float32) * 0.01

    # Feature indices considered "missing" (imputed from the reconstruction).
    missings = jnp.array([1, 5, 7, 20, 31], dtype=jnp.int32)

    # One-time prep (hoisted off the per-call path).
    w1p, b1p, w2p, b2p, mask = prepare_imputer_params(w1, b1, w2, b2, missings, D)

    # Reference is computed BEFORE the kernel call because x is donated (in-place).
    ref = reference_forward(x, missings, w1, b1, w2, b2)

    out = imputer_forward(x, mask, w1p, b1p, w2p, b2p, tb=32)
    jax.block_until_ready(out)

    assert out.shape == ref.shape
    # Tolerance covers MXU f32-matmul precision differences vs the XLA reference path.
    assert jnp.allclose(out, ref, atol=5e-3, rtol=5e-3), "mismatch vs reference"

    # TODO(synk): Imputer.predict/_merge (DataLoader/pandas inverse-transform glue) has no
    # Pallas equivalent.
    print("KERNEL_OK")
</pallas_src>

<mosaic_0001>
module attributes {stable_mosaic.version = 11 : i64} {
  func.func @imputer_kernel(%arg0: i32, %arg1: memref<32x32xf32, #tpu.memory_space<vmem>>, %arg2: memref<1x32xf32, #tpu.memory_space<vmem>>, %arg3: memref<32x16xf32, #tpu.memory_space<vmem>>, %arg4: memref<1x16xf32, #tpu.memory_space<vmem>>, %arg5: memref<16x32xf32, #tpu.memory_space<vmem>>, %arg6: memref<1x32xf32, #tpu.memory_space<vmem>>, %arg7: memref<32x32xf32, #tpu.memory_space<vmem>>) attributes {dimension_semantics = [#tpu.dimension_semantics<parallel>], iteration_bounds = array<i64: 2>, scalar_prefetch = 0 : i64, scratch_operands = 0 : i64, tpu.core_type = #tpu.core_type<tc>, window_params = [{transform_indices = @transform_0, window_bounds = array<i64: 32, 32>}, {pipeline_mode = #tpu.pipeline_mode<synchronous>, transform_indices = @transform_1, window_bounds = array<i64: 1, 32>}, {pipeline_mode = #tpu.pipeline_mode<synchronous>, transform_indices = @transform_2, window_bounds = array<i64: 32, 16>}, {pipeline_mode = #tpu.pipeline_mode<synchronous>, transform_indices = @transform_3, window_bounds = array<i64: 1, 16>}, {pipeline_mode = #tpu.pipeline_mode<synchronous>, transform_indices = @transform_4, window_bounds = array<i64: 16, 32>}, {pipeline_mode = #tpu.pipeline_mode<synchronous>, transform_indices = @transform_5, window_bounds = array<i64: 1, 32>}, {transform_indices = @transform_6, window_bounds = array<i64: 32, 32>}]} {
    %c0 = arith.constant 0 : index
    %c0_0 = arith.constant 0 : index
    %0 = vector.load %arg1[%c0, %c0_0] : memref<32x32xf32, #tpu.memory_space<vmem>>, vector<32x32xf32>
    %c0_1 = arith.constant 0 : index
    %c0_2 = arith.constant 0 : index
    %1 = vector.load %arg3[%c0_1, %c0_2] : memref<32x16xf32, #tpu.memory_space<vmem>>, vector<32x16xf32>
    %cst = arith.constant dense<0.000000e+00> : vector<32x16xf32>
    %2 = tpu.matmul %0, %1, %cst {dimension_numbers = #tpu.dot_dimension_numbers<[1], [0], [0], [1], [0, 0, 1, 1], [], []>} : vector<32x32xf32>, vector<32x16xf32>, vector<32x16xf32> -> vector<32x16xf32>
    %c0_3 = arith.constant 0 : index
    %c0_4 = arith.constant 0 : index
    %3 = vector.load %arg4[%c0_3, %c0_4] : memref<1x16xf32, #tpu.memory_space<vmem>>, vector<1x16xf32>
    %4 = vector.broadcast %3 : vector<1x16xf32> to vector<32x16xf32>
    %5 = arith.addf %2, %4 : vector<32x16xf32>
    %cst_5 = arith.constant 0.000000e+00 : f32
    %6 = vector.broadcast %cst_5 : f32 to vector<32x16xf32>
    %7 = arith.maximumf %5, %6 : vector<32x16xf32>
    %c0_6 = arith.constant 0 : index
    %c0_7 = arith.constant 0 : index
    %8 = vector.load %arg5[%c0_6, %c0_7] : memref<16x32xf32, #tpu.memory_space<vmem>>, vector<16x32xf32>
    %cst_8 = arith.constant dense<0.000000e+00> : vector<32x32xf32>
    %9 = tpu.matmul %7, %8, %cst_8 {dimension_numbers = #tpu.dot_dimension_numbers<[1], [0], [0], [1], [0, 0, 1, 1], [], []>} : vector<32x16xf32>, vector<16x32xf32>, vector<32x32xf32> -> vector<32x32xf32>
    %c0_9 = arith.constant 0 : index
    %c0_10 = arith.constant 0 : index
    %10 = vector.load %arg6[%c0_9, %c0_10] : memref<1x32xf32, #tpu.memory_space<vmem>>, vector<1x32xf32>
    %11 = vector.broadcast %10 : vector<1x32xf32> to vector<32x32xf32>
    %12 = arith.addf %9, %11 : vector<32x32xf32>
    %c0_11 = arith.constant 0 : index
    %c0_12 = arith.constant 0 : index
    %13 = vector.load %arg2[%c0_11, %c0_12] : memref<1x32xf32, #tpu.memory_space<vmem>>, vector<1x32xf32>
    %cst_13 = arith.constant 0.000000e+00 : f32
    %14 = vector.broadcast %cst_13 : f32 to vector<1x32xf32>
    %15 = arith.cmpf ogt, %13, %14 : vector<1x32xf32>
    %16 = vector.shape_cast %15 : vector<1x32xi1> to vector<1x32xi1>
    %17 = vector.broadcast %16 : vector<1x32xi1> to vector<32x32xi1>
    %18 = arith.select %17, %12, %0 : vector<32x32xi1>, vector<32x32xf32>
    %c0_14 = arith.constant 0 : index
    %c0_15 = arith.constant 0 : index
    %19 = vector.load %arg7[%c0_14, %c0_15] : memref<32x32xf32, #tpu.memory_space<vmem>>, vector<32x32xf32>
    tpu.vector_store %arg7[%c0_14, %c0_15], %18 {strides = array<i32>} : memref<32x32xf32, #tpu.memory_space<vmem>>, vector<32x32xf32>,
    return
  }
  func.func @transform_0(%arg0: i32) -> (i32, i32) {
    %c0_i32 = arith.constant 0 : i32
    %c0_i32_0 = arith.constant 0 : i32
    return %arg0, %c0_i32 : i32, i32
  }
  func.func @transform_1(%arg0: i32) -> (i32, i32) {
    %c0_i32 = arith.constant 0 : i32
    %c0_i32_0 = arith.constant 0 : i32
    %c0_i32_1 = arith.constant 0 : i32
    return %c0_i32, %c0_i32_0 : i32, i32
  }
  func.func @transform_2(%arg0: i32) -> (i32, i32) {
    %c0_i32 = arith.constant 0 : i32
    %c0_i32_0 = arith.constant 0 : i32
    %c0_i32_1 = arith.constant 0 : i32
    return %c0_i32, %c0_i32_0 : i32, i32
  }
  func.func @transform_3(%arg0: i32) -> (i32, i32) {
    %c0_i32 = arith.constant 0 : i32
    %c0_i32_0 = arith.constant 0 : i32
    %c0_i32_1 = arith.constant 0 : i32
    return %c0_i32, %c0_i32_0 : i32, i32
  }
  func.func @transform_4(%arg0: i32) -> (i32, i32) {
    %c0_i32 = arith.constant 0 : i32
    %c0_i32_0 = arith.constant 0 : i32
    %c0_i32_1 = arith.constant 0 : i32
    return %c0_i32, %c0_i32_0 : i32, i32
  }
  func.func @transform_5(%arg0: i32) -> (i32, i32) {
    %c0_i32 = arith.constant 0 : i32
    %c0_i32_0 = arith.constant 0 : i32
    %c0_i32_1 = arith.constant 0 : i32
    return %c0_i32, %c0_i32_0 : i32, i32
  }
  func.func @transform_6(%arg0: i32) -> (i32, i32) {
    %c0_i32 = arith.constant 0 : i32
    %c0_i32_0 = arith.constant 0 : i32
    return %arg0, %c0_i32 : i32, i32
  }
}

</mosaic_0001>

<llo_original>
// kernel: imputer_forward.1
$region0: #{imputer_forward.1}
  #allocation0 [shape = 'u32[]', space=smem, size = 0x4, offset = 0x4, fixed_abs, tag = 'smem constant byte address 0x4 - core index']
  #allocation1 [shape = 'u32[144,128]{1,0:T(1,128)}', space=vmem, size = 0x12000, scoped, tag = 'internal scratch']
  %s0 = inlined_call_operand.vmem [shape: f32[64,32], index: 0, kind: input, shape index: {}, may-alias: {0,6}]
  %s1 = inlined_call_operand.vmem [shape: f32[1,32], index: 1, kind: input, shape index: {}]
  %s2 = inlined_call_operand.vmem [shape: f32[32,16], index: 2, kind: input, shape index: {}]
  %s3 = inlined_call_operand.vmem [shape: f32[1,16], index: 3, kind: input, shape index: {}]
  %s4 = inlined_call_operand.vmem [shape: f32[16,32], index: 4, kind: input, shape index: {}]
  %s5 = inlined_call_operand.vmem [shape: f32[1,32], index: 5, kind: input, shape index: {}]
  %s6 = inlined_call_operand.vmem [shape: f32[64,32], index: 6, kind: output, shape index: {}, may-alias: {0,6}]
  %s7 = sld [smem:[#allocation0]]
  $region57: #{imputer_forward.1} parent=0
    _
  %s9 = ssub.s32 1, %s7
  %s10 = scalar_select 0, %s9, %s7
  loop: start=0, step=1, limit=4
  $region2: #{imputer_forward.1} parent=0 // loop_pre_header
    _
  $region3: #{imputer_forward.1} parent=0 // loop_header
    %s12 = sphi 0, %s16
    %p13 = scmp.ge.s32.totalorder %s12, 4
    %s22 = sphi 0, %s24
    %s25 = sphi 0, %s22
    %s26 = sphi 0, %s25
    %s42 = sphi 0, %s26
    %s46 = sphi 0, %s46
    %s48 = sphi 0, %s46
    %s49 = sphi 0, %s48
    %s63 = sphi 0, %s49
    %s67 = sphi 0, %s67
    %s69 = sphi 0, %s67
    %s70 = sphi 0, %s69
    %s84 = sphi 0, %s70
    %s88 = sphi 0, %s88
    %s90 = sphi 0, %s88
    %s91 = sphi 0, %s90
    %s105 = sphi 0, %s91
    %s109 = sphi 0, %s109
    %s111 = sphi 0, %s109
    %s112 = sphi 0, %s111
    %s126 = sphi 0, %s112
    %s130 = sphi 0, %s130
    %s132 = sphi 0, %s130
    %s133 = sphi 0, %s132
    %s147 = sphi 0, %s133
    %s153 = sphi 0, %s155
    %s156 = sphi 0, %s153
    %s157 = sphi 0, %s156
    %s173 = sphi 0, %s157
  $region4: #{imputer_forward.1} parent=0 // loop_header_branch
    %15 = sbr.rel (%p13) target = $region8
  $region5: #{imputer_forward.1} parent=0 // loop_body
    %s17 = ssub.s32 %s12, 1
    %s18 = ssub.s32 %s12, 2
    %s19 = sadd.s32 %s12, 1
    %s20 = ssub.s32 %s12, %s19
    %p21 = scmp.eq.s32.totalorder %s20, 0
    %s23 = sadd.s32 %s22, 1
    %s24 = scalar_select %p21, %s22, %s23
    %p27 = pneg %p21
    %p28 = scmp.eq.s32.totalorder %s12, 1
    %p29 = por %p27, %p28
    %p30 = scmp.ne.s32.totalorder %s22, %s25
    %p31 = scmp.eq.s32.totalorder %s12, 0
    %p32 = por %p30, %p31
    %p33 = scmp.ne.s32.totalorder %s22, %s25
    %p34 = scmp.eq.s32.totalorder %s17, 1
    %p35 = por %p33, %p34
    %p36 = scmp.ne.s32.totalorder %s25, %s26
    %p37 = scmp.eq.s32.totalorder %s17, 0
    %p38 = por %p36, %p37
    %p39 = scmp.ne.s32.totalorder %s25, %s26
    %p40 = scmp.eq.s32.totalorder %s18, 1
    %p41 = por %p39, %p40
    %p43 = scmp.ne.s32.totalorder %s26, %s42
    %p44 = scmp.eq.s32.totalorder %s18, 0
    %p45 = por %p43, %p44
    %s47 = sadd.s32 %s46, 1
    %p50 = scmp.eq.s32.totalorder %s12, 1
    %p51 = scmp.ne.s32.totalorder %s46, %s48
    %p52 = scmp.eq.s32.totalorder %s12, 0
    %p53 = por %p51, %p52
    %p54 = scmp.ne.s32.totalorder %s46, %s48
    %p55 = scmp.eq.s32.totalorder %s17, 1
    %p56 = por %p54, %p55
    %p57 = scmp.ne.s32.totalorder %s48, %s49
    %p58 = scmp.eq.s32.totalorder %s17, 0
    %p59 = por %p57, %p58
    %p60 = scmp.ne.s32.totalorder %s48, %s49
    %p61 = scmp.eq.s32.totalorder %s18, 1
    %p62 = por %p60, %p61
    %p64 = scmp.ne.s32.totalorder %s49, %s63
    %p65 = scmp.eq.s32.totalorder %s18, 0
    %p66 = por %p64, %p65
    %s68 = sadd.s32 %s67, 1
    %p71 = scmp.eq.s32.totalorder %s12, 1
    %p72 = scmp.ne.s32.totalorder %s67, %s69
    %p73 = scmp.eq.s32.totalorder %s12, 0
    %p74 = por %p72, %p73
    %p75 = scmp.ne.s32.totalorder %s67, %s69
    %p76 = scmp.eq.s32.totalorder %s17, 1
    %p77 = por %p75, %p76
    %p78 = scmp.ne.s32.totalorder %s69, %s70
    %p79 = scmp.eq.s32.totalorder %s17, 0
    %p80 = por %p78, %p79
    %p81 = scmp.ne.s32.totalorder %s69, %s70
    %p82 = scmp.eq.s32.totalorder %s18, 1
    %p83 = por %p81, %p82
    %p85 = scmp.ne.s32.totalorder %s70, %s84
    %p86 = scmp.eq.s32.totalorder %s18, 0
    %p87 = por %p85, %p86
    %s89 = sadd.s32 %s88, 1
    %p92 = scmp.eq.s32.totalorder %s12, 1
    %p93 = scmp.ne.s32.totalorder %s88, %s90
    %p94 = scmp.eq.s32.totalorder %s12, 0
    %p95 = por %p93, %p94
    %p96 = scmp.ne.s32.totalorder %s88, %s90
    %p97 = scmp.eq.s32.totalorder %s17, 1
    %p98 = por %p96, %p97
    %p99 = scmp.ne.s32.totalorder %s90, %s91
    %p100 = scmp.eq.s32.totalorder %s17, 0
    %p101 = por %p99, %p100
    %p102 = scmp.ne.s32.totalorder %s90, %s91
    %p103 = scmp.eq.s32.totalorder %s18, 1
    %p104 = por %p102, %p103
    %p106 = scmp.ne.s32.totalorder %s91, %s105
    %p107 = scmp.eq.s32.totalorder %s18, 0
    %p108 = por %p106, %p107
    %s110 = sadd.s32 %s109, 1
    %p113 = scmp.eq.s32.totalorder %s12, 1
    %p114 = scmp.ne.s32.totalorder %s109, %s111
    %p115 = scmp.eq.s32.totalorder %s12, 0
    %p116 = por %p114, %p115
    %p117 = scmp.ne.s32.totalorder %s109, %s111
    %p118 = scmp.eq.s32.totalorder %s17, 1
    %p119 = por %p117, %p118
    %p120 = scmp.ne.s32.totalorder %s111, %s112
    %p121 = scmp.eq.s32.totalorder %s17, 0
    %p122 = por %p120, %p121
    %p123 = scmp.ne.s32.totalorder %s111, %s112
    %p124 = scmp.eq.s32.totalorder %s18, 1
    %p125 = por %p123, %p124
    %p127 = scmp.ne.s32.totalorder %s112, %s126
    %p128 = scmp.eq.s32.totalorder %s18, 0
    %p129 = por %p127, %p128
    %s131 = sadd.s32 %s130, 1
    %p134 = scmp.eq.s32.totalorder %s12, 1
    %p135 = scmp.ne.s32.totalorder %s130, %s132
    %p136 = scmp.eq.s32.totalorder %s12, 0
    %p137 = por %p135, %p136
    %p138 = scmp.ne.s32.totalorder %s130, %s132
    %p139 = scmp.eq.s32.totalorder %s17, 1
    %p140 = por %p138, %p139
    %p141 = scmp.ne.s32.totalorder %s132, %s133
    %p142 = scmp.eq.s32.totalorder %s17, 0
    %p143 = por %p141, %p142
    %p144 = scmp.ne.s32.totalorder %s132, %s133
    %p145 = scmp.eq.s32.totalorder %s18, 1
    %p146 = por %p144, %p145
    %p148 = scmp.ne.s32.totalorder %s133, %s147
    %p149 = scmp.eq.s32.totalorder %s18, 0
    %p150 = por %p148, %p149
    %s151 = ssub.s32 %s12, %s19
    %p152 = scmp.eq.s32.totalorder %s151, 0
    %s154 = sadd.s32 %s153, 1
    %s155 = scalar_select %p152, %s153, %s154
    %p158 = pneg %p152
    %p159 = scmp.eq.s32.totalorder %s12, 1
    %p160 = por %p158, %p159
    %p161 = scmp.ne.s32.totalorder %s153, %s156
    %p162 = scmp.eq.s32.totalorder %s12, 0
    %p163 = por %p161, %p162
    %p164 = scmp.ne.s32.totalorder %s153, %s156
    %p165 = scmp.eq.s32.totalorder %s17, 1
    %p166 = por %p164, %p165
    %p167 = scmp.ne.s32.totalorder %s156, %s157
    %p168 = scmp.eq.s32.totalorder %s17, 0
    %p169 = por %p167, %p168
    %p170 = scmp.ne.s32.totalorder %s156, %s157
    %p171 = scmp.eq.s32.totalorder %s18, 1
    %p172 = por %p170, %p171
    %p174 = scmp.ne.s32.totalorder %s157, %s173
    %p175 = scmp.eq.s32.totalorder %s18, 0
    %p176 = por %p174, %p175
    %p177 = scmp.le.s32.totalorder 1, %s12
    %p178 = scmp.lt.s32.totalorder %s12, 3
    %p179 = pnand %p177, %p178
    %p180 = pneg %p179
    // Predicated region
    $region9: #{imputer_forward.1} parent=5 // pred_check
      _
    $region10: #{imputer_forward.1} parent=5 // pred_check_branch
      %182 = sbr.rel (%p179) target = $region12
    $region11: #{imputer_forward.1} parent=5 // pred_region
      %s183 = ssub.s32 %s12, 1
      // Predicated region
      $region13: #{imputer_forward.1} parent=11 // pred_check
        %p184 = pneg %p59
      $region14: #{imputer_forward.1} parent=11 // pred_check_branch
        %186 = sbr.rel (%p184) target = $region16
      $region15: #{imputer_forward.1} parent=11 // pred_region
        _
      $region16: #{imputer_forward.1} parent=11 // pred_fallthru
        _
      // Predicated region
      $region17: #{imputer_forward.1} parent=11 // pred_check
        %p187 = pneg %p80
      $region18: #{imputer_forward.1} parent=11 // pred_check_branch
        %189 = sbr.rel (%p187) target = $region20
      $region19: #{imputer_forward.1} parent=11 // pred_region
        _
      $region20: #{imputer_forward.1} parent=11 // pred_fallthru
        _
      // Predicated region
      $region21: #{imputer_forward.1} parent=11 // pred_check
        %p190 = pneg %p101
      $region22: #{imputer_forward.1} parent=11 // pred_check_branch
        %192 = sbr.rel (%p190) target = $region24
      $region23: #{imputer_forward.1} parent=11 // pred_region
        _
      $region24: #{imputer_forward.1} parent=11 // pred_fallthru
        _
      // Predicated region
      $region25: #{imputer_forward.1} parent=11 // pred_check
        %p193 = pneg %p122
      $region26: #{imputer_forward.1} parent=11 // pred_check_branch
        %195 = sbr.rel (%p193) target = $region28
      $region27: #{imputer_forward.1} parent=11 // pred_region
        _
      $region28: #{imputer_forward.1} parent=11 // pred_fallthru
        _
      // Predicated region
      $region29: #{imputer_forward.1} parent=11 // pred_check
        %p196 = pneg %p143
      $region30: #{imputer_forward.1} parent=11 // pred_check_branch
        %198 = sbr.rel (%p196) target = $region32
      $region31: #{imputer_forward.1} parent=11 // pred_region
        _
      $region32: #{imputer_forward.1} parent=11 // pred_fallthru
        _
    $region12: #{imputer_forward.1} parent=5 // pred_fallthru
      _
    %p199 = scmp.lt.s32.totalorder %s12, 2
    // Predicated region
    $region33: #{imputer_forward.1} parent=5 // pred_check
      %p200 = pneg %p199
    $region34: #{imputer_forward.1} parent=5 // pred_check_branch
      %202 = sbr.rel (%p200) target = $region36
    $region35: #{imputer_forward.1} parent=5 // pred_region
      // Predicated region
      $region37: #{imputer_forward.1} parent=35 // pred_check
        %p203 = pneg %p32
      $region38: #{imputer_forward.1} parent=35 // pred_check_branch
        %205 = sbr.rel (%p203) target = $region40
      $region39: #{imputer_forward.1} parent=35 // pred_region
        %s206 = smul.u32 4, %s12
        %p207 = scmp.lt.s32.totalorder %s206, 7
        %s208 = scalar_select %p207, %s206, 7
        %s209 = smul.addr %s208, 8
        %s210 = scalar_lea.vmem %s0, %s209
        %s211 = smul.u32 4, %s12
      $region40: #{imputer_forward.1} parent=35 // pred_fallthru
        _
    $region36: #{imputer_forward.1} parent=5 // pred_fallthru
      _
    %p212 = scmp.le.s32.totalorder 1, %s12
    %p213 = scmp.lt.s32.totalorder %s12, 3
    %p214 = pnand %p212, %p213
    %p215 = pneg %p214
    // Predicated region
    $region41: #{imputer_forward.1} parent=5 // pred_check
      _
    $region42: #{imputer_forward.1} parent=5 // pred_check_branch
      %217 = sbr.rel (%p214) target = $region44
    $region43: #{imputer_forward.1} parent=5 // pred_region
      %s218 = ssub.s32 %s12, 1
      %s219 = smul.u32 4, %s17
      %p220 = scmp.lt.s32.totalorder %s219, 7
      %s221 = scalar_select %p220, %s219, 7
      %s222 = smul.addr %s221, 8
      %s223 = scalar_lea.vmem %s0, %s222
      %p224 = pneg %p38
      %p225 = pneg %p35
      %p226 = pneg %p59
      %p227 = pneg %p56
      %p228 = pneg %p80
      %p229 = pneg %p77
      %p230 = pneg %p101
      %p231 = pneg %p98
      %p232 = pneg %p122
      %p233 = pneg %p119
      %p234 = pneg %p143
      %p235 = pneg %p140
      %p236 = pneg %p169
      %p237 = pneg %p166
      %s238 = smul.u32 4, %s17
      %p239 = scmp.lt.s32.totalorder %s238, 7
      %s240 = scalar_select %p239, %s238, 7
      %s241 = smul.addr %s240, 8
      %s242 = scalar_lea.vmem %s6, %s241
      %s243 = smul.u32 4, %s17
      %p244 = scmp.lt.s32.totalorder %s243, 7
      %s245 = scalar_select %p244, %s243, 7
      %s246 = smul.addr %s245, 8
      %s247 = scalar_lea.vmem %s0, %s246
      %s248 = smul.u32 4, %s17
      %s249 = smul.u32 4, %s17
      %p250 = scmp.lt.s32.totalorder %s249, 7
      %s251 = scalar_select %p250, %s249, 7
      %s252 = smul.addr %s251, 8
      %s253 = scalar_lea.vmem %s6, %s252
      %s254 = smul.u32 4, %s17
      %v255 = vld [vmem:[%s247] sm:$0xff]
      %v256 = vld [vmem:[%s247 + $0x8] sm:$0xff]
      %v257 = vld [vmem:[%s247 + $0x10] sm:$0xff]
      %v258 = vld [vmem:[%s247 + $0x18] sm:$0xff]
      %v259 = vld [vmem:[%s2] sm:$0xff]
      %v260 = vld [vmem:[%s2 + $0x8] sm:$0xff]
      %v261 = vld [vmem:[%s2 + $0x10] sm:$0xff]
      %v262 = vld [vmem:[%s2 + $0x18] sm:$0xff]
      %v263 = vld [vmem:[%s3] sm:$0x1]
      %v265 = vlaneseq
      %v266 = vshrl.u32 %v265, 7
      %v267 = vsub.s32 0, %v266
      %v268 = vrot.slane %v263, %v267
      %vm270 = vcmask 261120
      %v272 = vsel %vm270, %v255, 0
      %v275 = vsel %vm270, %v256, 0
      %v278 = vsel %vm270, %v257, 0
      %v281 = vsel %vm270, %v258, 0
      %283 = vmatprep.subr.mxu0 0.0
      %284 = vmatpush1.msra.mxu0 %v259
      %285 = vmatprep.subr.mxu0 0.0
      %286 = vmatpush1.msra.mxu0 %v260
      %287 = vmatprep.subr.mxu0 0.0
      %288 = vmatpush1.msra.mxu0 %v261
      %289 = vmatprep.subr.mxu0 0.0
      %290 = vmatpush1.msra.mxu0 %v262
      %291 = vmatprep.subr.mxu0 0.0
      %292 = vmatpush1.msra.mxu0 0.0
      %293 = vmatprep.subr.mxu0 0.0
      %294 = vmatpush1.msra.mxu0 0.0
      %295 = vmatprep.subr.mxu0 0.0
      %296 = vmatpush1.msra.mxu0 0.0
      %297 = vmatprep.subr.mxu0 0.0
      %298 = vmatpush1.msra.mxu0 0.0
      %299 = vmatprep.subr.mxu0 0.0
      %300 = vmatpush1.msra.mxu0 0.0
      %301 = vmatprep.subr.mxu0 0.0
      %302 = vmatpush1.msra.mxu0 0.0
      %303 = vmatprep.subr.mxu0 0.0
      %304 = vmatpush1.msra.mxu0 0.0
      %305 = vmatprep.subr.mxu0 0.0
      %306 = vmatpush1.msra.mxu0 0.0
      %307 = vmatprep.subr.mxu0 0.0
      %308 = vmatpush1.msra.mxu0 0.0
      %309 = vmatprep.subr.mxu0 0.0
      %310 = vmatpush1.msra.mxu0 0.0
      %311 = vmatprep.subr.mxu0 0.0
      %312 = vmatpush1.msra.mxu0 0.0
      %313 = vmatprep.subr.mxu0 0.0
      %314 = vmatpush1.msra.mxu0 0.0
      %315 = vmatprep.subr.mxu0 0.0
      %316 = vmatpush1.msra.mxu0 0.0
      %317 = vmatprep.subr.mxu0 0.0
      %318 = vmatpush1.msra.mxu0 0.0
      %319 = vmatprep.subr.mxu0 0.0
      %320 = vmatpush1.msra.mxu0 0.0
      %321 = vmatprep.subr.mxu0 0.0
      %322 = vmatpush1.msra.mxu0 0.0
      %323 = vmatprep.subr.mxu0 0.0
      %324 = vmatpush1.msra.mxu0 0.0
      %325 = vmatprep.subr.mxu0 0.0
      %326 = vmatpush1.msra.mxu0 0.0
      %327 = vmatprep.subr.mxu0 0.0
      %328 = vmatpush1.msra.mxu0 0.0
      %329 = vmatprep.subr.mxu0 0.0
      %330 = vmatpush1.msra.mxu0 0.0
      %331 = vmatprep.subr.mxu0 0.0
      %332 = vmatpush1.msra.mxu0 0.0
      %333 = vmatprep.subr.mxu0 0.0
      %334 = vmatpush1.msra.mxu0 0.0
      %335 = vmatprep.subr.mxu0 0.0
      %336 = vmatpush1.msra.mxu0 0.0
      %337 = vmatprep.subr.mxu0 0.0
      %338 = vmatpush1.msra.mxu0 0.0
      %339 = vmatprep.subr.mxu0 0.0
      %340 = vmatpush1.msra.mxu0 0.0
      %341 = vmatprep.subr.mxu0 0.0
      %342 = vmatpush1.msra.mxu0 0.0
      %343 = vmatprep.subr.mxu0 0.0
      %344 = vmatpush1.msra.mxu0 0.0
      %345 = vmatprep.subr.mxu0 0.0
      %346 = vmatpush1.msra.mxu0 0.0
      %347 = vmatprep.mubr.f32.mxu0 0.0
      %348 = vmatmul.mubr.f32.gmra.mrb[0].mxu0 %v272
      %v349 = vpop.f32.mrb[0].mxu0
      %v350 = vadd.f32 %v268, %v349
      %v351 = vpop.f32.mrb[0].mxu0
      %352 = vmatprep.mubr.f32.mxu0 0.0
      %353 = vmatmul.mubr.f32.gmra.mrb[0].mxu0 %v275
      %v354 = vpop.f32.mrb[0].mxu0
      %v355 = vadd.f32 %v268, %v354
      %v356 = vpop.f32.mrb[0].mxu0
      %357 = vmatprep.mubr.f32.mxu0 0.0
      %358 = vmatmul.mubr.f32.gmra.mrb[0].mxu0 %v278
      %v359 = vpop.f32.mrb[0].mxu0
      %v360 = vadd.f32 %v268, %v359
      %v361 = vpop.f32.mrb[0].mxu0
      %362 = vmatprep.mubr.f32.mxu0 0.0
      %363 = vmatmul.mubr.f32.gmra.mrb[0].mxu0 %v281
      %v364 = vpop.f32.mrb[0].mxu0
      %v365 = vadd.f32 %v268, %v364
      %v366 = vpop.f32.mrb[0].mxu0
      %367 = vdwg.mxu0
      %v368 = vmax.f32 %v350, 0.0
      %v369 = vmax.f32 %v355, 0.0
      %v370 = vmax.f32 %v360, 0.0
      %v371 = vmax.f32 %v365, 0.0
      %v372 = vld [vmem:[%s4] sm:$0xff]
      %v373 = vld [vmem:[%s4 + $0x8] sm:$0xff]
      %v374 = vld [vmem:[%s5] sm:$0x1]
      %v376 = vlaneseq
      %v377 = vshrl.u32 %v376, 7
      %v378 = vsub.s32 0, %v377
      %v379 = vrot.slane %v374, %v378
      %vm381 = vcmask 130048
      %v383 = vsel %vm381, %v368, 0
      %v386 = vsel %vm381, %v369, 0
      %v389 = vsel %vm381, %v370, 0
      %v392 = vsel %vm381, %v371, 0
      %394 = vmatprep.subr.mxu0 0.0
      %395 = vmatpush1.msra.mxu0 %v372
      %396 = vmatprep.subr.mxu0 0.0
      %397 = vmatpush1.msra.mxu0 %v373
      %398 = vmatprep.subr.mxu0 0.0
      %399 = vmatpush1.msra.mxu0 0.0
      %400 = vmatprep.subr.mxu0 0.0
      %401 = vmatpush1.msra.mxu0 0.0
      %402 = vmatprep.subr.mxu0 0.0
      %403 = vmatpush1.msra.mxu0 0.0
      %404 = vmatprep.subr.mxu0 0.0
      %405 = vmatpush1.msra.mxu0 0.0
      %406 = vmatprep.subr.mxu0 0.0
      %407 = vmatpush1.msra.mxu0 0.0
      %408 = vmatprep.subr.mxu0 0.0
      %409 = vmatpush1.msra.mxu0 0.0
      %410 = vmatprep.subr.mxu0 0.0
      %411 = vmatpush1.msra.mxu0 0.0
      %412 = vmatprep.subr.mxu0 0.0
      %413 = vmatpush1.msra.mxu0 0.0
      %414 = vmatprep.subr.mxu0 0.0
      %415 = vmatpush1.msra.mxu0 0.0
      %416 = vmatprep.subr.mxu0 0.0
      %417 = vmatpush1.msra.mxu0 0.0
      %418 = vmatprep.subr.mxu0 0.0
      %419 = vmatpush1.msra.mxu0 0.0
      %420 = vmatprep.subr.mxu0 0.0
      %421 = vmatpush1.msra.mxu0 0.0
      %422 = vmatprep.subr.mxu0 0.0
      %423 = vmatpush1.msra.mxu0 0.0
      %424 = vmatprep.subr.mxu0 0.0
      %425 = vmatpush1.msra.mxu0 0.0
      %426 = vmatprep.subr.mxu0 0.0
      %427 = vmatpush1.msra.mxu0 0.0
      %428 = vmatprep.subr.mxu0 0.0
      %429 = vmatpush1.msra.mxu0 0.0
      %430 = vmatprep.subr.mxu0 0.0
      %431 = vmatpush1.msra.mxu0 0.0
      %432 = vmatprep.subr.mxu0 0.0
      %433 = vmatpush1.msra.mxu0 0.0
      %434 = vmatprep.subr.mxu0 0.0
      %435 = vmatpush1.msra.mxu0 0.0
      %436 = vmatprep.subr.mxu0 0.0
      %437 = vmatpush1.msra.mxu0 0.0
      %438 = vmatprep.subr.mxu0 0.0
      %439 = vmatpush1.msra.mxu0 0.0
      %440 = vmatprep.subr.mxu0 0.0
      %441 = vmatpush1.msra.mxu0 0.0
      %442 = vmatprep.subr.mxu0 0.0
      %443 = vmatpush1.msra.mxu0 0.0
      %444 = vmatprep.subr.mxu0 0.0
      %445 = vmatpush1.msra.mxu0 0.0
      %446 = vmatprep.subr.mxu0 0.0
      %447 = vmatpush1.msra.mxu0 0.0
      %448 = vmatprep.subr.mxu0 0.0
      %449 = vmatpush1.msra.mxu0 0.0
      %450 = vmatprep.subr.mxu0 0.0
      %451 = vmatpush1.msra.mxu0 0.0
      %452 = vmatprep.subr.mxu0 0.0
      %453 = vmatpush1.msra.mxu0 0.0
      %454 = vmatprep.subr.mxu0 0.0
      %455 = vmatpush1.msra.mxu0 0.0
      %456 = vmatprep.subr.mxu0 0.0
      %457 = vmatpush1.msra.mxu0 0.0
      %458 = vmatprep.mubr.f32.mxu0 0.0
      %459 = vmatmul.mubr.f32.gmra.mrb[0].mxu0 %v383
      %v460 = vpop.f32.mrb[0].mxu0
      %v461 = vadd.f32 %v379, %v460
      %v462 = vpop.f32.mrb[0].mxu0
      %463 = vmatprep.mubr.f32.mxu0 0.0
      %464 = vmatmul.mubr.f32.gmra.mrb[0].mxu0 %v386
      %v465 = vpop.f32.mrb[0].mxu0
      %v466 = vadd.f32 %v379, %v465
      %v467 = vpop.f32.mrb[0].mxu0
      %468 = vmatprep.mubr.f32.mxu0 0.0
      %469 = vmatmul.mubr.f32.gmra.mrb[0].mxu0 %v389
      %v470 = vpop.f32.mrb[0].mxu0
      %v471 = vadd.f32 %v379, %v470
      %v472 = vpop.f32.mrb[0].mxu0
      %473 = vmatprep.mubr.f32.mxu0 0.0
      %474 = vmatmul.mubr.f32.gmra.mrb[0].mxu0 %v392
      %v475 = vpop.f32.mrb[0].mxu0
      %v476 = vadd.f32 %v379, %v475
      %v477 = vpop.f32.mrb[0].mxu0
      %478 = vdwg.mxu0
      %v479 = vld [vmem:[%s1] sm:$0x1]
      %vm480 = vcmp.gt.f32.partialorder %v479, 0.0
      %v481 = vsel %vm480, 1, 0
      %v482 = vlaneseq
      %v483 = vshrl.u32 %v482, 7
      %v484 = vsub.s32 0, %v483
      %v485 = vrot.slane %v481, %v484
      %vm486 = vcmp.eq.s32.totalorder %v485, 1
      %v487 = vsel %vm486, %v461, %v255
      %v488 = vsel %vm486, %v466, %v256
      %v489 = vsel %vm486, %v471, %v257
      %v490 = vsel %vm486, %v476, %v258
      %491 = vst.msk [vmem:[%s253] sm:$0xff] %vm270, %v487
      %492 = vst.msk [vmem:[%s253 + $0x8] sm:$0xff] %vm270, %v488
      %493 = vst.msk [vmem:[%s253 + $0x10] sm:$0xff] %vm270, %v489
      %494 = vst.msk [vmem:[%s253 + $0x18] sm:$0xff] %vm270, %v490
      %s495 = smul.u32 4, %s17
      %p496 = scmp.lt.s32.totalorder %s495, 7
      %s497 = scalar_select %p496, %s495, 7
      %s498 = smul.addr %s497, 8
      %s499 = scalar_lea.vmem %s6, %s498
      // Predicated region
      $region45: #{imputer_forward.1} parent=43 // pred_check
        %p500 = pneg %p166
      $region46: #{imputer_forward.1} parent=43 // pred_check_branch
        %502 = sbr.rel (%p500) target = $region48
      $region47: #{imputer_forward.1} parent=43 // pred_region
        %s503 = smul.u32 4, %s17
      $region48: #{imputer_forward.1} parent=43 // pred_fallthru
        _
    $region44: #{imputer_forward.1} parent=5 // pred_fallthru
      _
    %p504 = scmp.le.s32.totalorder 2, %s12
    // Predicated region
    $region49: #{imputer_forward.1} parent=5 // pred_check
      %p505 = pneg %p504
    $region50: #{imputer_forward.1} parent=5 // pred_check_branch
      %507 = sbr.rel (%p505) target = $region52
    $region51: #{imputer_forward.1} parent=5 // pred_region
      %s508 = ssub.s32 %s12, 2
      // Predicated region
      $region53: #{imputer_forward.1} parent=51 // pred_check
        %p509 = pneg %p172
      $region54: #{imputer_forward.1} parent=51 // pred_check_branch
        %511 = sbr.rel (%p509) target = $region56
      $region55: #{imputer_forward.1} parent=51 // pred_region
        %s512 = smul.u32 4, %s18
        %p513 = scmp.lt.s32.totalorder %s512, 7
        %s514 = scalar_select %p513, %s512, 7
        %s515 = smul.addr %s514, 8
        %s516 = scalar_lea.vmem %s6, %s515
      $region56: #{imputer_forward.1} parent=51 // pred_fallthru
        _
    $region52: #{imputer_forward.1} parent=5 // pred_fallthru
      _
  $region6: #{imputer_forward.1} parent=0 // loop_footer
    %s16 = sadd.s32 1, %s12
  $region7: #{imputer_forward.1} parent=0 // loop_footer_branch
    %11 = sbr.rel target = $region3
  $region8: #{imputer_forward.1} parent=0 // loop_exit
    _

</llo_original>
